<compile_context>
chip_gen: v5e
topology: v5e:2x2
jax: 0.10.0
libtpu: 0.0.40
codegen_flags: <defaults>
</compile_context>

<pallas_src>
import functools

import jax
import jax.numpy as jnp
from jax.experimental import pallas as pl
from jax.experimental.pallas import tpu as pltpu


def _round_up(x: int, m: int) -> int:
    return ((x + m - 1) // m) * m


def _pad2d(x, rows: int, cols: int):
    """Zero-pad a 2-D array up to (rows, cols); no-op copy avoided if aligned."""
    pr, pc = rows - x.shape[0], cols - x.shape[1]
    if pr == 0 and pc == 0:
        return x
    return jnp.pad(x, ((0, pr), (0, pc)))


def _adapter_kernel(*refs, add_residual: bool):
    """Fused adapter forward for one row tile.

    refs (add_residual=True):  (rw_ref[SMEM (1,)], x_ref, w1_ref, w2_ref, o_ref)
    refs (add_residual=False): (x_ref, w1_ref, w2_ref, o_ref)
      x_ref : VMEM (TM, in_p)      input row tile
      w1_ref: VMEM (in_p, hid_p)   linear1 weight (transposed layout, resident)
      w2_ref: VMEM (hid_p, out_p)  linear2 weight (transposed layout, resident)
      o_ref : VMEM (TM, out_p)     output row tile
    """
    if add_residual:
        rw_ref, x_ref, w1_ref, w2_ref, o_ref = refs
    else:
        x_ref, w1_ref, w2_ref, o_ref = refs

    x = x_ref[...]
    # linear1 + ReLU: bf16 x bf16 on the MXU, f32 accumulation.
    h = jnp.dot(x.astype(w1_ref.dtype), w1_ref[...],
                preferred_element_type=jnp.float32)
    h = jnp.maximum(h, 0.0)
    # linear2
    out = jnp.dot(h.astype(w2_ref.dtype), w2_ref[...],
                  preferred_element_type=jnp.float32)
    if add_residual:
        out = rw_ref[0] * out + x.astype(jnp.float32)
    o_ref[...] = out.astype(o_ref.dtype)


def llama_adapter_forward(embed, w1, w2, residual_weight=None, *,
                          add_residual: bool = False, row_tile: int = 256):
    """embed: (M, in_features) -> (M, out_features)."""
    M, in_f = embed.shape
    in_w, hid_f = w1.shape
    hid_w, out_f = w2.shape
    assert in_w == in_f and hid_w == hid_f, "weights must be (in,hid) / (hid,out)"
    if add_residual:
        assert in_f == out_f, "residual requires in_features == out_features"
        assert residual_weight is not None

    # Lane-dense padding: feature axes to multiples of 128.  Zero padding keeps
    # the math exact (relu(0)=0; padded weight rows/cols are zero).
    in_p = _round_up(in_f, 128)
    hid_p = _round_up(hid_f, 128)
    out_p = _round_up(out_f, 128)

    # Row tile: big enough to fill the MXU M dimension; multiple of 16 so a
    # bf16 activation tile packs full vregs; clamped for tiny inputs.
    tm = min(_round_up(max(row_tile, 16), 16), _round_up(M, 16))
    m_p = _round_up(M, tm)
    grid = (m_p // tm,)

    x_p = _pad2d(embed, m_p, in_p)
    w1_p = _pad2d(w1, in_p, hid_p)
    w2_p = _pad2d(w2, hid_p, out_p)

    # VMEM budget: double-buffered activation tiles + resident weights
    # (counted conservatively at 2 buffers) + f32 intermediates + headroom.
    x_bytes = jnp.dtype(embed.dtype).itemsize
    w_bytes = jnp.dtype(w1.dtype).itemsize
    need = (2 * tm * in_p * x_bytes          # input row tiles
            + 2 * tm * out_p * x_bytes       # output row tiles
            + 2 * in_p * hid_p * w_bytes     # w1 (resident)
            + 2 * hid_p * out_p * w_bytes    # w2 (resident)
            + tm * hid_p * 4                 # f32 hidden intermediate
            + tm * out_p * 4                 # f32 output accumulator
            + (4 << 20))                     # headroom
    vmem_limit = int(min(max(need, 32 << 20), 128 << 20))
    # TODO(synk): for very large hidden/out dims on v7x (64 MiB VMEM), add a
    # hidden grid axis (relu is elementwise over hidden, so the second matmul
    # decomposes as a sum over hidden tiles with a pl.when-initialized VMEM
    # accumulator) instead of keeping the full weights resident.

    kernel = functools.partial(_adapter_kernel, add_residual=add_residual)

    def _weight_spec(shape, pipeline_mode):
        kwargs = {} if pipeline_mode is None else {"pipeline_mode": pipeline_mode}
        return pl.BlockSpec(shape, lambda i: (0, 0), **kwargs)

    def _run(weight_pipeline_mode):
        in_specs = []
        args = []
        if add_residual:
            # residual_weight scalar lives in SMEM, identical for every tile.
            in_specs.append(pl.BlockSpec(memory_space=pltpu.MemorySpace.SMEM))
            args.append(jnp.asarray(residual_weight, jnp.float32).reshape((1,)))
        in_specs += [
            pl.BlockSpec((tm, in_p), lambda i: (i, 0)),           # input tile
            _weight_spec((in_p, hid_p), weight_pipeline_mode),    # w1, resident
            _weight_spec((hid_p, out_p), weight_pipeline_mode),   # w2, resident
        ]
        args += [x_p, w1_p, w2_p]
        return pl.pallas_call(
            kernel,
            out_shape=jax.ShapeDtypeStruct((m_p, out_p), embed.dtype),
            grid=grid,
            in_specs=in_specs,
            out_specs=pl.BlockSpec((tm, out_p), lambda i: (i, 0)),
            compiler_params=pltpu.CompilerParams(
                dimension_semantics=("parallel",),
                vmem_limit_bytes=vmem_limit),
        )(*args)

    try:
        # Weights are grid-invariant (fetched once), so a second pipeline
        # buffer only wastes VMEM: request single buffering for them.
        out_pad = _run(pl.Buffered(1))
    except Exception:
        # Fallback for jax versions where pipeline_mode isn't accepted on
        # pallas_call BlockSpecs: default double buffering.
        out_pad = _run(None)

    return out_pad[:M, :out_f]


class LlamaAdapterPallas:
    """JAX/Pallas equivalent of the PyTorch LlamaAdapter (bias=False path)."""

    def __init__(self, in_features: int, hidden_features: int, out_features: int,
                 bias: bool = False, add_residual: bool = False, key=None,
                 param_dtype=jnp.bfloat16):
        assert not bias, "bias=False (PyTorch default) is the implemented path"
        # TODO(synk): add bias terms if bias=True is ever needed.
        self.in_features = in_features
        self.hidden_features = hidden_features
        self.out_features = out_features
        self.add_residual = add_residual
        if key is None:
            key = jax.random.PRNGKey(0)
        k1, k2 = jax.random.split(key)
        # Uniform init ~ U(-1/sqrt(fan_in), 1/sqrt(fan_in)), same scheme as
        # nn.Linear; stored transposed (in, out) and in bf16 for the MXU.
        b1 = 1.0 / float(jnp.sqrt(jnp.float32(in_features)))
        b2 = 1.0 / float(jnp.sqrt(jnp.float32(hidden_features)))
        self.w1 = jax.random.uniform(k1, (in_features, hidden_features),
                                     jnp.float32, -b1, b1).astype(param_dtype)
        self.w2 = jax.random.uniform(k2, (hidden_features, out_features),
                                     jnp.float32, -b2, b2).astype(param_dtype)
        # PyTorch initializes residual_weight to zeros.
        self.residual_weight = jnp.zeros((1,), jnp.float32)

    def __call__(self, embed, *, row_tile: int = 256):
        lead = embed.shape[:-1]
        x2 = embed.reshape(-1, self.in_features)
        out = llama_adapter_forward(x2, self.w1, self.w2, self.residual_weight,
                                    add_residual=self.add_residual,
                                    row_tile=row_tile)
        return out.reshape(*lead, self.out_features)


def _reference(embed, w1, w2, rw, add_residual):
    x = embed.astype(jnp.float32)
    h = jnp.maximum(x @ w1.astype(jnp.float32), 0.0)
    out = h @ w2.astype(jnp.float32)
    if add_residual:
        out = rw[0] * out + x
    return out.astype(embed.dtype)


if __name__ == "__main__":
    key = jax.random.PRNGKey(0)
    k_in, k_p1, k_in2, k_p2, k_in3, k_p3 = jax.random.split(key, 6)

    # Test 1: residual path (in == out), 2-D input.
    M, IN, HID, OUT = 16, 32, 64, 32
    embed = jax.random.normal(k_in, (M, IN), jnp.float32)
    adapter = LlamaAdapterPallas(IN, HID, OUT, bias=False, add_residual=True,
                                 key=k_p1)
    # Non-zero residual weight so the matmul path is actually exercised.
    adapter.residual_weight = jnp.full((1,), 0.5, jnp.float32)
    out = jax.block_until_ready(adapter(embed))
    ref = _reference(embed, adapter.w1, adapter.w2, adapter.residual_weight, True)
    assert out.shape == (M, OUT)
    assert jnp.allclose(out, ref, atol=5e-2, rtol=5e-2), "mismatch vs reference"

    # Test 2: no residual, in != out, unaligned feature dims, 3-D input.
    B, S, IN2, HID2, OUT2 = 2, 8, 48, 96, 40
    x3 = jax.random.normal(k_in2, (B, S, IN2), jnp.float32)
    adapter2 = LlamaAdapterPallas(IN2, HID2, OUT2, bias=False,
                                  add_residual=False, key=k_p2)
    out2 = jax.block_until_ready(adapter2(x3))
    ref2 = _reference(x3.reshape(-1, IN2), adapter2.w1, adapter2.w2,
                      adapter2.residual_weight, False).reshape(B, S, OUT2)
    assert out2.shape == (B, S, OUT2)
    assert jnp.allclose(out2, ref2, atol=5e-2, rtol=5e-2), "mismatch vs reference"

    # Test 3: multi-step grid (rows > tile, non-multiple of tile) + residual.
    M3, IN3, HID3, OUT3 = 300, 64, 128, 64
    x4 = jax.random.normal(k_in3, (M3, IN3), jnp.float32)
    adapter3 = LlamaAdapterPallas(IN3, HID3, OUT3, bias=False, add_residual=True,
                                  key=k_p3)
    adapter3.residual_weight = jnp.full((1,), 0.25, jnp.float32)
    out3 = jax.block_until_ready(adapter3(x4, row_tile=256))
    ref3 = _reference(x4, adapter3.w1, adapter3.w2, adapter3.residual_weight, True)
    assert out3.shape == (M3, OUT3)
    assert jnp.allclose(out3, ref3, atol=5e-2, rtol=5e-2), "mismatch vs reference"

    print("KERNEL_OK")
</pallas_src>

<mosaic_0001>
module attributes {stable_mosaic.version = 11 : i64} {
  func.func @_adapter_kernel(%arg0: i32, %arg1: memref<1xf32, #tpu.memory_space<smem>>, %arg2: memref<16x128xf32, #tpu.memory_space<vmem>>, %arg3: memref<128x128xbf16, #tpu.memory_space<vmem>>, %arg4: memref<128x128xbf16, #tpu.memory_space<vmem>>, %arg5: memref<16x128xf32, #tpu.memory_space<vmem>>) attributes {dimension_semantics = [#tpu.dimension_semantics<parallel>], iteration_bounds = array<i64: 1>, scalar_prefetch = 0 : i64, scratch_operands = 0 : i64, tpu.core_type = #tpu.core_type<tc>, window_params = [{transform_indices = @transform_0, window_bounds = array<i64: 1>}, {transform_indices = @transform_1, window_bounds = array<i64: 16, 128>}, {pipeline_mode = #tpu.pipeline_mode<synchronous>, transform_indices = @transform_2, window_bounds = array<i64: 128, 128>}, {pipeline_mode = #tpu.pipeline_mode<synchronous>, transform_indices = @transform_3, window_bounds = array<i64: 128, 128>}, {transform_indices = @transform_4, window_bounds = array<i64: 16, 128>}]} {
    %c0 = arith.constant 0 : index
    %c0_0 = arith.constant 0 : index
    %0 = vector.load %arg2[%c0, %c0_0] : memref<16x128xf32, #tpu.memory_space<vmem>>, vector<16x128xf32>
    %1 = arith.truncf %0 : vector<16x128xf32> to vector<16x128xbf16>
    %c0_1 = arith.constant 0 : index
    %c0_2 = arith.constant 0 : index
    %2 = vector.load %arg3[%c0_1, %c0_2] : memref<128x128xbf16, #tpu.memory_space<vmem>>, vector<128x128xbf16>
    %cst = arith.constant dense<0.000000e+00> : vector<16x128xf32>
    %3 = tpu.matmul %1, %2, %cst {dimension_numbers = #tpu.dot_dimension_numbers<[1], [0], [0], [1], [0, 0, 1, 1], [], []>} : vector<16x128xbf16>, vector<128x128xbf16>, vector<16x128xf32> -> vector<16x128xf32>
    %cst_3 = arith.constant 0.000000e+00 : f32
    %4 = vector.broadcast %cst_3 : f32 to vector<16x128xf32>
    %5 = arith.maximumf %3, %4 : vector<16x128xf32>
    %6 = arith.truncf %5 : vector<16x128xf32> to vector<16x128xbf16>
    %c0_4 = arith.constant 0 : index
    %c0_5 = arith.constant 0 : index
    %7 = vector.load %arg4[%c0_4, %c0_5] : memref<128x128xbf16, #tpu.memory_space<vmem>>, vector<128x128xbf16>
    %cst_6 = arith.constant dense<0.000000e+00> : vector<16x128xf32>
    %8 = tpu.matmul %6, %7, %cst_6 {dimension_numbers = #tpu.dot_dimension_numbers<[1], [0], [0], [1], [0, 0, 1, 1], [], []>} : vector<16x128xbf16>, vector<128x128xbf16>, vector<16x128xf32> -> vector<16x128xf32>
    %c0_7 = arith.constant 0 : index
    %9 = memref.load %arg1[%c0_7] : memref<1xf32, #tpu.memory_space<smem>>
    %10 = vector.broadcast %9 : f32 to vector<16x128xf32>
    %11 = arith.mulf %10, %8 : vector<16x128xf32>
    %12 = arith.addf %11, %0 : vector<16x128xf32>
    %c0_8 = arith.constant 0 : index
    %c0_9 = arith.constant 0 : index
    %13 = vector.load %arg5[%c0_8, %c0_9] : memref<16x128xf32, #tpu.memory_space<vmem>>, vector<16x128xf32>
    tpu.vector_store %arg5[%c0_8, %c0_9], %12 {strides = array<i32>} : memref<16x128xf32, #tpu.memory_space<vmem>>, vector<16x128xf32>,
    return
  }
  func.func @transform_0(%arg0: i32) -> i32 {
    %c0_i32 = arith.constant 0 : i32
    %c0_i32_0 = arith.constant 0 : i32
    return %c0_i32 : i32
  }
  func.func @transform_1(%arg0: i32) -> (i32, i32) {
    %c0_i32 = arith.constant 0 : i32
    %c0_i32_0 = arith.constant 0 : i32
    return %arg0, %c0_i32 : i32, i32
  }
  func.func @transform_2(%arg0: i32) -> (i32, i32) {
    %c0_i32 = arith.constant 0 : i32
    %c0_i32_0 = arith.constant 0 : i32
    %c0_i32_1 = arith.constant 0 : i32
    return %c0_i32, %c0_i32_0 : i32, i32
  }
  func.func @transform_3(%arg0: i32) -> (i32, i32) {
    %c0_i32 = arith.constant 0 : i32
    %c0_i32_0 = arith.constant 0 : i32
    %c0_i32_1 = arith.constant 0 : i32
    return %c0_i32, %c0_i32_0 : i32, i32
  }
  func.func @transform_4(%arg0: i32) -> (i32, i32) {
    %c0_i32 = arith.constant 0 : i32
    %c0_i32_0 = arith.constant 0 : i32
    return %arg0, %c0_i32 : i32, i32
  }
}

module attributes {stable_mosaic.version = 11 : i64} {
  func.func @_adapter_kernel(%arg0: i32, %arg1: memref<1xf32, #tpu.memory_space<smem>>, %arg2: memref<16x128xf32, #tpu.memory_space<vmem>>, %arg3: memref<128x128xbf16, #tpu.memory_space<vmem>>, %arg4: memref<128x128xbf16, #tpu.memory_space<vmem>>, %arg5: memref<16x128xf32, #tpu.memory_space<vmem>>) attributes {dimension_semantics = [#tpu.dimension_semantics<parallel>], iteration_bounds = array<i64: 1>, scalar_prefetch = 0 : i64, scratch_operands = 0 : i64, tpu.core_type = #tpu.core_type<tc>, window_params = [{transform_indices = @transform_0, window_bounds = array<i64: 1>}, {transform_indices = @transform_1, window_bounds = array<i64: 16, 128>}, {pipeline_mode = #tpu.pipeline_mode<synchronous>, transform_indices = @transform_2, window_bounds = array<i64: 128, 128>}, {pipeline_mode = #tpu.pipeline_mode<synchronous>, transform_indices = @transform_3, window_bounds = array<i64: 128, 128>}, {transform_indices = @transform_4, window_bounds = array<i64: 16, 128>}]} {
    %c0 = arith.constant 0 : index
    %c0_0 = arith.constant 0 : index
    %0 = vector.load %arg2[%c0, %c0_0] : memref<16x128xf32, #tpu.memory_space<vmem>>, vector<16x128xf32>
    %1 = arith.truncf %0 : vector<16x128xf32> to vector<16x128xbf16>
    %c0_1 = arith.constant 0 : index
    %c0_2 = arith.constant 0 : index
    %2 = vector.load %arg3[%c0_1, %c0_2] : memref<128x128xbf16, #tpu.memory_space<vmem>>, vector<128x128xbf16>
    %cst = arith.constant dense<0.000000e+00> : vector<16x128xf32>
    %3 = tpu.matmul %1, %2, %cst {dimension_numbers = #tpu.dot_dimension_numbers<[1], [0], [0], [1], [0, 0, 1, 1], [], []>} : vector<16x128xbf16>, vector<128x128xbf16>, vector<16x128xf32> -> vector<16x128xf32>
    %cst_3 = arith.constant 0.000000e+00 : f32
    %4 = vector.broadcast %cst_3 : f32 to vector<16x128xf32>
    %5 = arith.maximumf %3, %4 : vector<16x128xf32>
    %6 = arith.truncf %5 : vector<16x128xf32> to vector<16x128xbf16>
    %c0_4 = arith.constant 0 : index
    %c0_5 = arith.constant 0 : index
    %7 = vector.load %arg4[%c0_4, %c0_5] : memref<128x128xbf16, #tpu.memory_space<vmem>>, vector<128x128xbf16>
    %cst_6 = arith.constant dense<0.000000e+00> : vector<16x128xf32>
    %8 = tpu.matmul %6, %7, %cst_6 {dimension_numbers = #tpu.dot_dimension_numbers<[1], [0], [0], [1], [0, 0, 1, 1], [], []>} : vector<16x128xbf16>, vector<128x128xbf16>, vector<16x128xf32> -> vector<16x128xf32>
    %c0_7 = arith.constant 0 : index
    %9 = memref.load %arg1[%c0_7] : memref<1xf32, #tpu.memory_space<smem>>
    %10 = vector.broadcast %9 : f32 to vector<16x128xf32>
    %11 = arith.mulf %10, %8 : vector<16x128xf32>
    %12 = arith.addf %11, %0 : vector<16x128xf32>
    %c0_8 = arith.constant 0 : index
    %c0_9 = arith.constant 0 : index
    %13 = vector.load %arg5[%c0_8, %c0_9] : memref<16x128xf32, #tpu.memory_space<vmem>>, vector<16x128xf32>
    tpu.vector_store %arg5[%c0_8, %c0_9], %12 {strides = array<i32>} : memref<16x128xf32, #tpu.memory_space<vmem>>, vector<16x128xf32>,
    return
  }
  func.func @transform_0(%arg0: i32) -> i32 {
    %c0_i32 = arith.constant 0 : i32
    %c0_i32_0 = arith.constant 0 : i32
    return %c0_i32 : i32
  }
  func.func @transform_1(%arg0: i32) -> (i32, i32) {
    %c0_i32 = arith.constant 0 : i32
    %c0_i32_0 = arith.constant 0 : i32
    return %arg0, %c0_i32 : i32, i32
  }
  func.func @transform_2(%arg0: i32) -> (i32, i32) {
    %c0_i32 = arith.constant 0 : i32
    %c0_i32_0 = arith.constant 0 : i32
    %c0_i32_1 = arith.constant 0 : i32
    return %c0_i32, %c0_i32_0 : i32, i32
  }
  func.func @transform_3(%arg0: i32) -> (i32, i32) {
    %c0_i32 = arith.constant 0 : i32
    %c0_i32_0 = arith.constant 0 : i32
    %c0_i32_1 = arith.constant 0 : i32
    return %c0_i32, %c0_i32_0 : i32, i32
  }
  func.func @transform_4(%arg0: i32) -> (i32, i32) {
    %c0_i32 = arith.constant 0 : i32
    %c0_i32_0 = arith.constant 0 : i32
    return %arg0, %c0_i32 : i32, i32
  }
}

</mosaic_0001>

<llo_original>
// kernel: tpu_custom_call.1
$region0: #{tpu_custom_call.1}
  #allocation0 [shape = 'u32[]', space=smem, size = 0x4, offset = 0x4, fixed_abs, tag = 'smem constant byte address 0x4 - core index']
  #allocation1 [shape = 'u32[72,128]{1,0:T(1,128)}', space=vmem, size = 0x9000, scoped, tag = 'internal scratch']
  #allocation2 [shape = 'f32[1]{0:T(128)S(6)}', space=smem, size = 0x200, scoped, tag = 'scoped memory for tpu_custom_call.1']
  %s0 = inlined_call_operand.<no memory space> [shape: f32[1], index: 0, kind: input, shape index: {}]
  %s1 = inlined_call_operand.hbm [shape: f32[16,128], index: 1, kind: input, shape index: {}]
  %s2 = inlined_call_operand.hbm [shape: bf16[128,128], index: 2, kind: input, shape index: {}]
  %s3 = inlined_call_operand.hbm [shape: bf16[128,128], index: 3, kind: input, shape index: {}]
  %s4 = inlined_call_operand.hbm [shape: f32[16,128], index: 4, kind: output, shape index: {}]
  %s5 = sld [smem:[#allocation0]]
  $region38: #{tpu_custom_call.1} parent=0
    _
  %s7 = ssub.s32 1, %s5
  %s8 = scalar_select 0, %s7, %s5
  %9 = sst [smem:[#allocation2]] %s0
  $region1: #{tpu_custom_call.1} parent=0
    #allocation3 [shape = 'u8[8192]{0}', space=vmem, size = 0x2000, scoped, tag = 'input window, operand 1, single buffered']
    #allocation4 [shape = 's32[1]{0}', space=sflag, size = 0x4, scoped, tag = 'scoped memory for tpu_custom_call.1']
    #allocation5 [shape = 's32[1]{0}', space=sflag, size = 0x4, scoped, tag = 'scoped memory for tpu_custom_call.1']
    #allocation6 [shape = 'u8[32768]{0}', space=vmem, size = 0x8000, scoped, tag = 'input window, operand 2, single buffered']
    #allocation7 [shape = 's32[1]{0}', space=sflag, size = 0x4, scoped, tag = 'scoped memory for tpu_custom_call.1']
    #allocation8 [shape = 'u8[32768]{0}', space=vmem, size = 0x8000, scoped, tag = 'input window, operand 3, single buffered']
    #allocation9 [shape = 'u8[8192]{0}', space=vmem, size = 0x2000, scoped, tag = 'output window, operand 0, single buffered']
    %10 = vsyncpa [#allocation4], 0
    %11 = vsyncpa [#allocation7], 0
    %12 = vsyncpa [#allocation5], 0
    // Predicated region
    $region2: #{tpu_custom_call.1} parent=1 // pred_check
      _
    $region3: #{tpu_custom_call.1} parent=1 // pred_check_branch
      %14 = sbr.rel (0) target = $region5
    $region4: #{tpu_custom_call.1} parent=1 // pred_region
      _
    $region5: #{tpu_custom_call.1} parent=1 // pred_fallthru
      _
    // Predicated region
    $region6: #{tpu_custom_call.1} parent=1 // pred_check
      _
    $region7: #{tpu_custom_call.1} parent=1 // pred_check_branch
      %16 = sbr.rel (0) target = $region9
    $region8: #{tpu_custom_call.1} parent=1 // pred_region
      %18 = vsyncadd [#allocation4], 0
      %s19 = sshll.u32 %s1, 4
      %s20 = int_to_ptr.hbm [resolvable:$true] %s19
      %s21 = sshll.u32 [#allocation3], 4
      %s22 = int_to_ptr.vmem [resolvable:$true] %s21
      %27 = dma.hbm_to_vmem [thread:$0]  %s20, 256, %s22, [#allocation4], 128, 128, 8
    $region9: #{tpu_custom_call.1} parent=1 // pred_fallthru
      _
    // Predicated region
    $region10: #{tpu_custom_call.1} parent=1 // pred_check
      _
    $region11: #{tpu_custom_call.1} parent=1 // pred_check_branch
      %29 = sbr.rel (0) target = $region13
    $region12: #{tpu_custom_call.1} parent=1 // pred_region
      %31 = vsyncadd [#allocation7], 0
      %s32 = sshll.u32 %s2, 4
      %s33 = int_to_ptr.hbm [resolvable:$true] %s32
      %s34 = sshll.u32 [#allocation6], 4
      %s35 = int_to_ptr.vmem [resolvable:$true] %s34
      %40 = dma.hbm_to_vmem [thread:$0]  %s33, 1024, %s35, [#allocation7], 64, 64, 4
    $region13: #{tpu_custom_call.1} parent=1 // pred_fallthru
      _
    // Predicated region
    $region14: #{tpu_custom_call.1} parent=1 // pred_check
      _
    $region15: #{tpu_custom_call.1} parent=1 // pred_check_branch
      %42 = sbr.rel (0) target = $region17
    $region16: #{tpu_custom_call.1} parent=1 // pred_region
      %44 = vsyncadd [#allocation7], 0
      %s45 = sshll.u32 %s3, 4
      %s46 = int_to_ptr.hbm [resolvable:$true] %s45
      %s47 = sshll.u32 [#allocation8], 4
      %s48 = int_to_ptr.vmem [resolvable:$true] %s47
      %53 = dma.hbm_to_vmem [thread:$0]  %s46, 1024, %s48, [#allocation7], 64, 64, 4
    $region17: #{tpu_custom_call.1} parent=1 // pred_fallthru
      _
    // Predicated region
    $region18: #{tpu_custom_call.1} parent=1 // pred_check
      _
    $region19: #{tpu_custom_call.1} parent=1 // pred_check_branch
      %55 = sbr.rel (0) target = $region21
    $region20: #{tpu_custom_call.1} parent=1 // pred_region
      %57 = dma.done [#allocation4], 256
    $region21: #{tpu_custom_call.1} parent=1 // pred_fallthru
      _
    // Predicated region
    $region22: #{tpu_custom_call.1} parent=1 // pred_check
      _
    $region23: #{tpu_custom_call.1} parent=1 // pred_check_branch
      %59 = sbr.rel (0) target = $region25
    $region24: #{tpu_custom_call.1} parent=1 // pred_region
      %61 = dma.done [#allocation7], 1024
    $region25: #{tpu_custom_call.1} parent=1 // pred_fallthru
      _
    // Predicated region
    $region26: #{tpu_custom_call.1} parent=1 // pred_check
      _
    $region27: #{tpu_custom_call.1} parent=1 // pred_check_branch
      %63 = sbr.rel (0) target = $region29
    $region28: #{tpu_custom_call.1} parent=1 // pred_region
      %65 = dma.done [#allocation7], 1024
    $region29: #{tpu_custom_call.1} parent=1 // pred_fallthru
      _
    %v66 = vld [vmem:[#allocation3] sm:$0xff]
    %v67 = vld [vmem:[#allocation3 + $0x8] sm:$0xff]
    %v68 = vpack.c.bf16 %v67, %v66
    %v69 = vld [vmem:[#allocation6] sm:$0xf]
    %v70 = vld [vmem:[#allocation6 + $0x4] sm:$0xf]
    %v71 = vld [vmem:[#allocation6 + $0x8] sm:$0xf]
    %v72 = vld [vmem:[#allocation6 + $0xc] sm:$0xf]
    %v73 = vld [vmem:[#allocation6 + $0x10] sm:$0xf]
    %v74 = vld [vmem:[#allocation6 + $0x14] sm:$0xf]
    %v75 = vld [vmem:[#allocation6 + $0x18] sm:$0xf]
    %v76 = vld [vmem:[#allocation6 + $0x1c] sm:$0xf]
    %v77 = vld [vmem:[#allocation6 + $0x20] sm:$0xf]
    %v78 = vld [vmem:[#allocation6 + $0x24] sm:$0xf]
    %v79 = vld [vmem:[#allocation6 + $0x28] sm:$0xf]
    %v80 = vld [vmem:[#allocation6 + $0x2c] sm:$0xf]
    %v81 = vld [vmem:[#allocation6 + $0x30] sm:$0xf]
    %v82 = vld [vmem:[#allocation6 + $0x34] sm:$0xf]
    %v83 = vld [vmem:[#allocation6 + $0x38] sm:$0xf]
    %v84 = vld [vmem:[#allocation6 + $0x3c] sm:$0xf]
    %v101 = vunpack.c.l.b16 %v69
    %v102 = vunpack.c.l.b16 %v70
    %v103 = vunpack.c.l.b16 %v71
    %v104 = vunpack.c.l.b16 %v72
    %v105 = vunpack.c.l.b16 %v73
    %v106 = vunpack.c.l.b16 %v74
    %v107 = vunpack.c.l.b16 %v75
    %v108 = vunpack.c.l.b16 %v76
    %v109 = vunpack.c.l.b16 %v77
    %v110 = vunpack.c.l.b16 %v78
    %v111 = vunpack.c.l.b16 %v79
    %v112 = vunpack.c.l.b16 %v80
    %v113 = vunpack.c.l.b16 %v81
    %v114 = vunpack.c.l.b16 %v82
    %v115 = vunpack.c.l.b16 %v83
    %v116 = vunpack.c.l.b16 %v84
    %v117 = vpack.c.b16 %v102, %v101
    %v118 = vpack.c.b16 %v104, %v103
    %v119 = vpack.c.b16 %v106, %v105
    %v120 = vpack.c.b16 %v108, %v107
    %v121 = vpack.c.b16 %v110, %v109
    %v122 = vpack.c.b16 %v112, %v111
    %v123 = vpack.c.b16 %v114, %v113
    %v124 = vpack.c.b16 %v116, %v115
    %133 = vmatpush.bf16.msra.mxu0 %v124
    %134 = vmatpush.bf16.msra.mxu0 %v123
    %135 = vmatpush.bf16.msra.mxu0 %v122
    %136 = vmatpush.bf16.msra.mxu0 %v121
    %137 = vmatpush.bf16.msra.mxu0 %v120
    %138 = vmatpush.bf16.msra.mxu0 %v119
    %139 = vmatpush.bf16.msra.mxu0 %v118
    %140 = vmatpush.bf16.msra.mxu0 %v117
    %141 = vmatmul.bf16.gmra.mxu0 %v68
    %v142 = vpop.f32.mrf.mxu0
    %v143 = vadd.f32 0.0, %v142
    %v144 = vpop.f32.mrf.mxu0
    %v145 = vadd.f32 0.0, %v144
    %146 = vdwg.mxu0
    %v147 = vmax.f32 %v143, 0.0
    %v148 = vmax.f32 %v145, 0.0
    %v149 = vpack.c.bf16 %v148, %v147
    %v150 = vld [vmem:[#allocation8] sm:$0xf]
    %v151 = vld [vmem:[#allocation8 + $0x4] sm:$0xf]
    %v152 = vld [vmem:[#allocation8 + $0x8] sm:$0xf]
    %v153 = vld [vmem:[#allocation8 + $0xc] sm:$0xf]
    %v154 = vld [vmem:[#allocation8 + $0x10] sm:$0xf]
    %v155 = vld [vmem:[#allocation8 + $0x14] sm:$0xf]
    %v156 = vld [vmem:[#allocation8 + $0x18] sm:$0xf]
    %v157 = vld [vmem:[#allocation8 + $0x1c] sm:$0xf]
    %v158 = vld [vmem:[#allocation8 + $0x20] sm:$0xf]
    %v159 = vld [vmem:[#allocation8 + $0x24] sm:$0xf]
    %v160 = vld [vmem:[#allocation8 + $0x28] sm:$0xf]
    %v161 = vld [vmem:[#allocation8 + $0x2c] sm:$0xf]
    %v162 = vld [vmem:[#allocation8 + $0x30] sm:$0xf]
    %v163 = vld [vmem:[#allocation8 + $0x34] sm:$0xf]
    %v164 = vld [vmem:[#allocation8 + $0x38] sm:$0xf]
    %v165 = vld [vmem:[#allocation8 + $0x3c] sm:$0xf]
    %v182 = vunpack.c.l.b16 %v150
    %v183 = vunpack.c.l.b16 %v151
    %v184 = vunpack.c.l.b16 %v152
    %v185 = vunpack.c.l.b16 %v153
    %v186 = vunpack.c.l.b16 %v154
    %v187 = vunpack.c.l.b16 %v155
    %v188 = vunpack.c.l.b16 %v156
    %v189 = vunpack.c.l.b16 %v157
    %v190 = vunpack.c.l.b16 %v158
    %v191 = vunpack.c.l.b16 %v159
    %v192 = vunpack.c.l.b16 %v160
    %v193 = vunpack.c.l.b16 %v161
    %v194 = vunpack.c.l.b16 %v162
    %v195 = vunpack.c.l.b16 %v163
    %v196 = vunpack.c.l.b16 %v164
    %v197 = vunpack.c.l.b16 %v165
    %v198 = vpack.c.b16 %v183, %v182
    %v199 = vpack.c.b16 %v185, %v184
    %v200 = vpack.c.b16 %v187, %v186
    %v201 = vpack.c.b16 %v189, %v188
    %v202 = vpack.c.b16 %v191, %v190
    %v203 = vpack.c.b16 %v193, %v192
    %v204 = vpack.c.b16 %v195, %v194
    %v205 = vpack.c.b16 %v197, %v196
    %214 = vmatpush.bf16.msra.mxu0 %v205
    %215 = vmatpush.bf16.msra.mxu0 %v204
    %216 = vmatpush.bf16.msra.mxu0 %v203
    %217 = vmatpush.bf16.msra.mxu0 %v202
    %218 = vmatpush.bf16.msra.mxu0 %v201
    %219 = vmatpush.bf16.msra.mxu0 %v200
    %220 = vmatpush.bf16.msra.mxu0 %v199
    %221 = vmatpush.bf16.msra.mxu0 %v198
    %222 = vmatmul.bf16.gmra.mxu0 %v149
    %v223 = vpop.f32.mrf.mxu0
    %v224 = vadd.f32 0.0, %v223
    %v225 = vpop.f32.mrf.mxu0
    %v226 = vadd.f32 0.0, %v225
    %227 = vdwg.mxu0
    %s228 = sld [smem:[#allocation2]]
    %v229 = vstv %s228
    %v230 = vmul.f32 %v229, %v224
    %v231 = vmul.f32 %v229, %v226
    %v232 = vadd.f32 %v230, %v66
    %v233 = vadd.f32 %v231, %v67
    %234 = vst [vmem:[#allocation9] sm:$0xff] %v232
    %235 = vst [vmem:[#allocation9 + $0x8] sm:$0xff] %v233
    // Predicated region
    $region30: #{tpu_custom_call.1} parent=1 // pred_check
      _
    $region31: #{tpu_custom_call.1} parent=1 // pred_check_branch
      %237 = sbr.rel (0) target = $region33
    $region32: #{tpu_custom_call.1} parent=1 // pred_region
      %239 = vsyncadd [#allocation5], 0
      %s240 = sshll.u32 [#allocation9], 4
      %s241 = int_to_ptr.vmem [resolvable:$true] %s240
      %s242 = sshll.u32 %s4, 4
      %s243 = int_to_ptr.hbm [resolvable:$true] %s242
      %248 = dma.vmem_to_hbm [thread:$0]  %s241, 256, %s243, [#allocation5], 128, 128, 8
    $region33: #{tpu_custom_call.1} parent=1 // pred_fallthru
      _
    // Predicated region
    $region34: #{tpu_custom_call.1} parent=1 // pred_check
      _
    $region35: #{tpu_custom_call.1} parent=1 // pred_check_branch
      %250 = sbr.rel (0) target = $region37
    $region36: #{tpu_custom_call.1} parent=1 // pred_region
      %252 = dma.done [#allocation5], 256
    $region37: #{tpu_custom_call.1} parent=1 // pred_fallthru
      _
    %253 = vsyncpa [#allocation4], 1
    %254 = vsyncpa [#allocation7], 1
    %255 = vsyncpa [#allocation5], 1

// kernel: tpu_custom_call.1
$region0: #{tpu_custom_call.1}
  #allocation0 [shape = 'u32[]', space=smem, size = 0x4, offset = 0x4, fixed_abs, tag = 'smem constant byte address 0x4 - core index']
  #allocation1 [shape = 'u32[72,128]{1,0:T(1,128)}', space=vmem, size = 0x9000, scoped, tag = 'internal scratch']
  #allocation2 [shape = 'f32[1]{0:T(128)S(6)}', space=smem, size = 0x200, scoped, tag = 'scoped memory for tpu_custom_call.1']
  %s0 = inlined_call_operand.<no memory space> [shape: f32[1], index: 0, kind: input, shape index: {}]
  %s1 = inlined_call_operand.hbm [shape: f32[16,128], index: 1, kind: input, shape index: {}]
  %s2 = inlined_call_operand.hbm [shape: bf16[128,128], index: 2, kind: input, shape index: {}]
  %s3 = inlined_call_operand.hbm [shape: bf16[128,128], index: 3, kind: input, shape index: {}]
  %s4 = inlined_call_operand.hbm [shape: f32[16,128], index: 4, kind: output, shape index: {}]
  %s5 = sld [smem:[#allocation0]]
  $region38: #{tpu_custom_call.1} parent=0
    _
  %s7 = ssub.s32 1, %s5
  %s8 = scalar_select 0, %s7, %s5
  %9 = sst [smem:[#allocation2]] %s0
  $region1: #{tpu_custom_call.1} parent=0
    #allocation3 [shape = 'u8[8192]{0}', space=vmem, size = 0x2000, scoped, tag = 'input window, operand 1, single buffered']
    #allocation4 [shape = 's32[1]{0}', space=sflag, size = 0x4, scoped, tag = 'scoped memory for tpu_custom_call.1']
    #allocation5 [shape = 's32[1]{0}', space=sflag, size = 0x4, scoped, tag = 'scoped memory for tpu_custom_call.1']
    #allocation6 [shape = 'u8[32768]{0}', space=vmem, size = 0x8000, scoped, tag = 'input window, operand 2, single buffered']
    #allocation7 [shape = 's32[1]{0}', space=sflag, size = 0x4, scoped, tag = 'scoped memory for tpu_custom_call.1']
    #allocation8 [shape = 'u8[32768]{0}', space=vmem, size = 0x8000, scoped, tag = 'input window, operand 3, single buffered']
    #allocation9 [shape = 'u8[8192]{0}', space=vmem, size = 0x2000, scoped, tag = 'output window, operand 0, single buffered']
    %10 = vsyncpa [#allocation4], 0
    %11 = vsyncpa [#allocation7], 0
    %12 = vsyncpa [#allocation5], 0
    // Predicated region
    $region2: #{tpu_custom_call.1} parent=1 // pred_check
      _
    $region3: #{tpu_custom_call.1} parent=1 // pred_check_branch
      %14 = sbr.rel (0) target = $region5
    $region4: #{tpu_custom_call.1} parent=1 // pred_region
      _
    $region5: #{tpu_custom_call.1} parent=1 // pred_fallthru
      _
    // Predicated region
    $region6: #{tpu_custom_call.1} parent=1 // pred_check
      _
    $region7: #{tpu_custom_call.1} parent=1 // pred_check_branch
      %16 = sbr.rel (0) target = $region9
    $region8: #{tpu_custom_call.1} parent=1 // pred_region
      %18 = vsyncadd [#allocation4], 0
      %s19 = sshll.u32 %s1, 4
      %s20 = int_to_ptr.hbm [resolvable:$true] %s19
      %s21 = sshll.u32 [#allocation3], 4
      %s22 = int_to_ptr.vmem [resolvable:$true] %s21
      %27 = dma.hbm_to_vmem [thread:$0]  %s20, 256, %s22, [#allocation4], 128, 128, 8
    $region9: #{tpu_custom_call.1} parent=1 // pred_fallthru
      _
    // Predicated region
    $region10: #{tpu_custom_call.1} parent=1 // pred_check
      _
    $region11: #{tpu_custom_call.1} parent=1 // pred_check_branch
      %29 = sbr.rel (0) target = $region13
    $region12: #{tpu_custom_call.1} parent=1 // pred_region
      %31 = vsyncadd [#allocation7], 0
      %s32 = sshll.u32 %s2, 4
      %s33 = int_to_ptr.hbm [resolvable:$true] %s32
      %s34 = sshll.u32 [#allocation6], 4
      %s35 = int_to_ptr.vmem [resolvable:$true] %s34
      %40 = dma.hbm_to_vmem [thread:$0]  %s33, 1024, %s35, [#allocation7], 64, 64, 4
    $region13: #{tpu_custom_call.1} parent=1 // pred_fallthru
      _
    // Predicated region
    $region14: #{tpu_custom_call.1} parent=1 // pred_check
      _
    $region15: #{tpu_custom_call.1} parent=1 // pred_check_branch
      %42 = sbr.rel (0) target = $region17
    $region16: #{tpu_custom_call.1} parent=1 // pred_region
      %44 = vsyncadd [#allocation7], 0
      %s45 = sshll.u32 %s3, 4
      %s46 = int_to_ptr.hbm [resolvable:$true] %s45
      %s47 = sshll.u32 [#allocation8], 4
      %s48 = int_to_ptr.vmem [resolvable:$true] %s47
      %53 = dma.hbm_to_vmem [thread:$0]  %s46, 1024, %s48, [#allocation7], 64, 64, 4
    $region17: #{tpu_custom_call.1} parent=1 // pred_fallthru
      _
    // Predicated region
    $region18: #{tpu_custom_call.1} parent=1 // pred_check
      _
    $region19: #{tpu_custom_call.1} parent=1 // pred_check_branch
      %55 = sbr.rel (0) target = $region21
    $region20: #{tpu_custom_call.1} parent=1 // pred_region
      %57 = dma.done [#allocation4], 256
    $region21: #{tpu_custom_call.1} parent=1 // pred_fallthru
      _
    // Predicated region
    $region22: #{tpu_custom_call.1} parent=1 // pred_check
      _
    $region23: #{tpu_custom_call.1} parent=1 // pred_check_branch
      %59 = sbr.rel (0) target = $region25
    $region24: #{tpu_custom_call.1} parent=1 // pred_region
      %61 = dma.done [#allocation7], 1024
    $region25: #{tpu_custom_call.1} parent=1 // pred_fallthru
      _
    // Predicated region
    $region26: #{tpu_custom_call.1} parent=1 // pred_check
      _
    $region27: #{tpu_custom_call.1} parent=1 // pred_check_branch
      %63 = sbr.rel (0) target = $region29
    $region28: #{tpu_custom_call.1} parent=1 // pred_region
      %65 = dma.done [#allocation7], 1024
    $region29: #{tpu_custom_call.1} parent=1 // pred_fallthru
      _
    %v66 = vld [vmem:[#allocation3] sm:$0xff]
    %v67 = vld [vmem:[#allocation3 + $0x8] sm:$0xff]
    %v68 = vpack.c.bf16 %v67, %v66
    %v69 = vld [vmem:[#allocation6] sm:$0xf]
    %v70 = vld [vmem:[#allocation6 + $0x4] sm:$0xf]
    %v71 = vld [vmem:[#allocation6 + $0x8] sm:$0xf]
    %v72 = vld [vmem:[#allocation6 + $0xc] sm:$0xf]
    %v73 = vld [vmem:[#allocation6 + $0x10] sm:$0xf]
    %v74 = vld [vmem:[#allocation6 + $0x14] sm:$0xf]
    %v75 = vld [vmem:[#allocation6 + $0x18] sm:$0xf]
    %v76 = vld [vmem:[#allocation6 + $0x1c] sm:$0xf]
    %v77 = vld [vmem:[#allocation6 + $0x20] sm:$0xf]
    %v78 = vld [vmem:[#allocation6 + $0x24] sm:$0xf]
    %v79 = vld [vmem:[#allocation6 + $0x28] sm:$0xf]
    %v80 = vld [vmem:[#allocation6 + $0x2c] sm:$0xf]
    %v81 = vld [vmem:[#allocation6 + $0x30] sm:$0xf]
    %v82 = vld [vmem:[#allocation6 + $0x34] sm:$0xf]
    %v83 = vld [vmem:[#allocation6 + $0x38] sm:$0xf]
    %v84 = vld [vmem:[#allocation6 + $0x3c] sm:$0xf]
    %v101 = vunpack.c.l.b16 %v69
    %v102 = vunpack.c.l.b16 %v70
    %v103 = vunpack.c.l.b16 %v71
    %v104 = vunpack.c.l.b16 %v72
    %v105 = vunpack.c.l.b16 %v73
    %v106 = vunpack.c.l.b16 %v74
    %v107 = vunpack.c.l.b16 %v75
    %v108 = vunpack.c.l.b16 %v76
    %v109 = vunpack.c.l.b16 %v77
    %v110 = vunpack.c.l.b16 %v78
    %v111 = vunpack.c.l.b16 %v79
    %v112 = vunpack.c.l.b16 %v80
    %v113 = vunpack.c.l.b16 %v81
    %v114 = vunpack.c.l.b16 %v82
    %v115 = vunpack.c.l.b16 %v83
    %v116 = vunpack.c.l.b16 %v84
    %v117 = vpack.c.b16 %v102, %v101
    %v118 = vpack.c.b16 %v104, %v103
    %v119 = vpack.c.b16 %v106, %v105
    %v120 = vpack.c.b16 %v108, %v107
    %v121 = vpack.c.b16 %v110, %v109
    %v122 = vpack.c.b16 %v112, %v111
    %v123 = vpack.c.b16 %v114, %v113
    %v124 = vpack.c.b16 %v116, %v115
    %133 = vmatpush.bf16.msra.mxu0 %v124
    %134 = vmatpush.bf16.msra.mxu0 %v123
    %135 = vmatpush.bf16.msra.mxu0 %v122
    %136 = vmatpush.bf16.msra.mxu0 %v121
    %137 = vmatpush.bf16.msra.mxu0 %v120
    %138 = vmatpush.bf16.msra.mxu0 %v119
    %139 = vmatpush.bf16.msra.mxu0 %v118
    %140 = vmatpush.bf16.msra.mxu0 %v117
    %141 = vmatmul.bf16.gmra.mxu0 %v68
    %v142 = vpop.f32.mrf.mxu0
    %v143 = vadd.f32 0.0, %v142
    %v144 = vpop.f32.mrf.mxu0
    %v145 = vadd.f32 0.0, %v144
    %146 = vdwg.mxu0
    %v147 = vmax.f32 %v143, 0.0
    %v148 = vmax.f32 %v145, 0.0
    %v149 = vpack.c.bf16 %v148, %v147
    %v150 = vld [vmem:[#allocation8] sm:$0xf]
    %v151 = vld [vmem:[#allocation8 + $0x4] sm:$0xf]
    %v152 = vld [vmem:[#allocation8 + $0x8] sm:$0xf]
    %v153 = vld [vmem:[#allocation8 + $0xc] sm:$0xf]
    %v154 = vld [vmem:[#allocation8 + $0x10] sm:$0xf]
    %v155 = vld [vmem:[#allocation8 + $0x14] sm:$0xf]
    %v156 = vld [vmem:[#allocation8 + $0x18] sm:$0xf]
    %v157 = vld [vmem:[#allocation8 + $0x1c] sm:$0xf]
    %v158 = vld [vmem:[#allocation8 + $0x20] sm:$0xf]
    %v159 = vld [vmem:[#allocation8 + $0x24] sm:$0xf]
    %v160 = vld [vmem:[#allocation8 + $0x28] sm:$0xf]
    %v161 = vld [vmem:[#allocation8 + $0x2c] sm:$0xf]
    %v162 = vld [vmem:[#allocation8 + $0x30] sm:$0xf]
    %v163 = vld [vmem:[#allocation8 + $0x34] sm:$0xf]
    %v164 = vld [vmem:[#allocation8 + $0x38] sm:$0xf]
    %v165 = vld [vmem:[#allocation8 + $0x3c] sm:$0xf]
    %v182 = vunpack.c.l.b16 %v150
    %v183 = vunpack.c.l.b16 %v151
    %v184 = vunpack.c.l.b16 %v152
    %v185 = vunpack.c.l.b16 %v153
    %v186 = vunpack.c.l.b16 %v154
    %v187 = vunpack.c.l.b16 %v155
    %v188 = vunpack.c.l.b16 %v156
    %v189 = vunpack.c.l.b16 %v157
    %v190 = vunpack.c.l.b16 %v158
    %v191 = vunpack.c.l.b16 %v159
    %v192 = vunpack.c.l.b16 %v160
    %v193 = vunpack.c.l.b16 %v161
    %v194 = vunpack.c.l.b16 %v162
    %v195 = vunpack.c.l.b16 %v163
    %v196 = vunpack.c.l.b16 %v164
    %v197 = vunpack.c.l.b16 %v165
    %v198 = vpack.c.b16 %v183, %v182
    %v199 = vpack.c.b16 %v185, %v184
    %v200 = vpack.c.b16 %v187, %v186
    %v201 = vpack.c.b16 %v189, %v188
    %v202 = vpack.c.b16 %v191, %v190
    %v203 = vpack.c.b16 %v193, %v192
    %v204 = vpack.c.b16 %v195, %v194
    %v205 = vpack.c.b16 %v197, %v196
    %214 = vmatpush.bf16.msra.mxu0 %v205
    %215 = vmatpush.bf16.msra.mxu0 %v204
    %216 = vmatpush.bf16.msra.mxu0 %v203
    %217 = vmatpush.bf16.msra.mxu0 %v202
    %218 = vmatpush.bf16.msra.mxu0 %v201
    %219 = vmatpush.bf16.msra.mxu0 %v200
    %220 = vmatpush.bf16.msra.mxu0 %v199
    %221 = vmatpush.bf16.msra.mxu0 %v198
    %222 = vmatmul.bf16.gmra.mxu0 %v149
    %v223 = vpop.f32.mrf.mxu0
    %v224 = vadd.f32 0.0, %v223
    %v225 = vpop.f32.mrf.mxu0
    %v226 = vadd.f32 0.0, %v225
    %227 = vdwg.mxu0
    %s228 = sld [smem:[#allocation2]]
    %v229 = vstv %s228
    %v230 = vmul.f32 %v229, %v224
    %v231 = vmul.f32 %v229, %v226
    %v232 = vadd.f32 %v230, %v66
    %v233 = vadd.f32 %v231, %v67
    %234 = vst [vmem:[#allocation9] sm:$0xff] %v232
    %235 = vst [vmem:[#allocation9 + $0x8] sm:$0xff] %v233
    // Predicated region
    $region30: #{tpu_custom_call.1} parent=1 // pred_check
      _
    $region31: #{tpu_custom_call.1} parent=1 // pred_check_branch
      %237 = sbr.rel (0) target = $region33
    $region32: #{tpu_custom_call.1} parent=1 // pred_region
      %239 = vsyncadd [#allocation5], 0
      %s240 = sshll.u32 [#allocation9], 4
      %s241 = int_to_ptr.vmem [resolvable:$true] %s240
      %s242 = sshll.u32 %s4, 4
      %s243 = int_to_ptr.hbm [resolvable:$true] %s242
      %248 = dma.vmem_to_hbm [thread:$0]  %s241, 256, %s243, [#allocation5], 128, 128, 8
    $region33: #{tpu_custom_call.1} parent=1 // pred_fallthru
      _
    // Predicated region
    $region34: #{tpu_custom_call.1} parent=1 // pred_check
      _
    $region35: #{tpu_custom_call.1} parent=1 // pred_check_branch
      %250 = sbr.rel (0) target = $region37
    $region36: #{tpu_custom_call.1} parent=1 // pred_region
      %252 = dma.done [#allocation5], 256
    $region37: #{tpu_custom_call.1} parent=1 // pred_fallthru
      _
    %253 = vsyncpa [#allocation4], 1
    %254 = vsyncpa [#allocation7], 1
    %255 = vsyncpa [#allocation5], 1

</llo_original>
